<compile_context>
chip_gen: v5e
topology: v5e:2x2
jax: 0.10.0
libtpu: 0.0.40
codegen_flags: <defaults>
</compile_context>

<pallas_src>
import functools
import math

import jax
import jax.numpy as jnp
from jax.experimental import pallas as pl
from jax.experimental.pallas import tpu as pltpu

_LANE_W = 1024        # lane-dense output width (multiple of 128 -> unmasked stores)
_MAX_BLOCK_R = 512    # 512 x 1024 x 4B = 2 MiB per f32 block (well under VMEM limits)

# murmur3 / golden-ratio constants, expressed as int32 two's complement.
_C1 = -2048144789     # 0x85EBCA6B
_C2 = -1028477387     # 0xC2B2AE35
_GOLD = -1640531527   # 0x9E3779B9


def _lshr(x, n):
    """Logical right shift for int32 values (arithmetic shift + mask)."""
    return (x >> n) & jnp.int32((1 << (32 - n)) - 1)


def _erfinv_f32(x):
    """Single-precision inverse error function (Giles 2010 polynomial), |x| < 1."""
    w = -jnp.log((1.0 - x) * (1.0 + x))
    # Central branch (w < 5).
    wc = w - 2.5
    pc = jnp.float32(2.81022636e-08)
    for c in (3.43273939e-07, -3.5233877e-06, -4.39150654e-06, 0.00021858087,
              -0.00125372503, -0.00417768164, 0.246640727, 1.50140941):
        pc = pc * wc + c
    # Tail branch (w >= 5).
    wt = jnp.sqrt(w) - 3.0
    pt = jnp.float32(-0.000200214257)
    for c in (0.000100950558, 0.00134934322, -0.00367342844, 0.00573950773,
              -0.0076224613, 0.00943887047, 1.00167406, 2.83297682):
        pt = pt * wt + c
    return jnp.where(w < 5.0, pc, pt) * x


def _noise_kernel(seed_ref, o_ref, *, std, block_elems):
    blk = o_ref.shape  # (block_r, _LANE_W)

    # Unique int32 counter per element of the whole (padded) output.
    row = jax.lax.broadcasted_iota(jnp.int32, blk, 0)
    col = jax.lax.broadcasted_iota(jnp.int32, blk, 1)
    cnt = pl.program_id(0) * block_elems + row * blk[1] + col

    # Stateless counter-based bits: Weyl pre-multiply + murmur3 fmix32 finalizer.
    smix = seed_ref[0] * jnp.int32(_GOLD) + jnp.int32(0x7F4A7C15)
    h = cnt * jnp.int32(_GOLD) + smix
    h = h ^ _lshr(h, 16)
    h = h * jnp.int32(_C1)
    h = h ^ _lshr(h, 13)
    h = h * jnp.int32(_C2)
    h = h ^ _lshr(h, 16)

    # Top 23 bits -> uniform strictly inside (0, 1); the half-ulp offset keeps
    # |2u - 1| <= 1 - 2^-23 so the inverse CDF stays finite (no clamp needed).
    m23 = _lshr(h, 9).astype(jnp.float32)          # [0, 2^23), exact in f32
    u = (m23 + 0.5) * (1.0 / (1 << 23))            # (0, 1), exact scaling
    x = 2.0 * u - 1.0                              # (-1, 1)

    # z ~ N(0, 1) via z = sqrt(2) * erfinv(2u - 1): one uniform per output.
    z = _erfinv_f32(x)

    # eps = std * z; the module returns input + eps where input was already
    # overwritten in place by normal_(), i.e. 2 * eps.  Fold the doubling and
    # the sqrt(2) into a single scale constant.
    o_ref[...] = (z * (2.0 * std * math.sqrt(2.0))).astype(o_ref.dtype)


def noise_forward(x, std, seed=0):
    """Equivalent of noise(std).forward(x).

    Returns 2 * N(0, std) noise with x's shape/dtype.  The values of x are
    never read (matching the PyTorch module, which clobbers the input
    in place before adding it to itself).
    """
    orig_shape = x.shape
    orig_dtype = x.dtype
    total = 1
    for d in orig_shape:
        total *= d

    rows = -(-total // _LANE_W)                    # ceil-div to lane-dense rows
    block_r = min(rows, _MAX_BLOCK_R)
    grid_r = -(-rows // block_r)
    rows = grid_r * block_r                        # pad so blocks divide evenly
    block_elems = block_r * _LANE_W

    seed_arr = jnp.asarray([seed], dtype=jnp.int32)
    kernel = functools.partial(_noise_kernel, std=float(std),
                               block_elems=block_elems)

    out2d = pl.pallas_call(
        kernel,
        out_shape=jax.ShapeDtypeStruct((rows, _LANE_W), orig_dtype),
        grid_spec=pltpu.PrefetchScalarGridSpec(
            num_scalar_prefetch=1,
            grid=(grid_r,),
            in_specs=[],                           # no tensor inputs -> no wasted HBM reads
            out_specs=pl.BlockSpec((block_r, _LANE_W), lambda i, seed: (i, 0)),
        ),
        compiler_params=pltpu.CompilerParams(
            dimension_semantics=("parallel",),     # shards across 2 TCs on v7x
        ),
    )(seed_arr)

    out_flat = jnp.reshape(out2d, (-1,))[:total]
    return jnp.reshape(out_flat, orig_shape)


if __name__ == "__main__":
    key = jax.random.PRNGKey(0)
    # Small NCHW input consistent with the module's usage on image features.
    x = jax.random.normal(key, (2, 4, 16, 16), dtype=jnp.float32)

    std = 0.1
    out = noise_forward(x, std, seed=0)
    out = jax.block_until_ready(out)

    assert out.shape == x.shape and out.dtype == x.dtype

    # Sanity: output should look like 2 * N(0, std): mean ~ 0, std ~ 2*std.
    m = float(jnp.mean(out))
    s = float(jnp.std(out))
    assert abs(m) < 0.05, f"mean off: {m}"
    assert abs(s - 2.0 * std) < 0.06, f"std off: {s}"

    print("KERNEL_OK")
</pallas_src>

<mosaic_0001>
module attributes {stable_mosaic.version = 11 : i64} {
  func.func @_noise_kernel(%arg0: i32, %arg1: memref<1xi32, #tpu.memory_space<smem>>, %arg2: memref<2x1024xf32, #tpu.memory_space<vmem>>) attributes {dimension_semantics = [#tpu.dimension_semantics<parallel>], iteration_bounds = array<i64: 1>, scalar_prefetch = 1 : i64, scratch_operands = 0 : i64, tpu.core_type = #tpu.core_type<tc>, window_params = [{transform_indices = @transform_0, window_bounds = array<i64: 2, 1024>}]} {
    %0 = tpu.iota {dimensions = array<i32: 0>} : vector<2x1024xi32>
    %1 = tpu.iota {dimensions = array<i32: 1>} : vector<2x1024xi32>
    %c2048_i32 = arith.constant 2048 : i32
    %2 = arith.muli %arg0, %c2048_i32 : i32
    %c1024_i32 = arith.constant 1024 : i32
    %3 = vector.broadcast %c1024_i32 : i32 to vector<2x1024xi32>
    %4 = arith.muli %0, %3 : vector<2x1024xi32>
    %5 = vector.broadcast %2 : i32 to vector<2x1024xi32>
    %6 = arith.addi %5, %4 : vector<2x1024xi32>
    %7 = arith.addi %6, %1 : vector<2x1024xi32>
    %c0 = arith.constant 0 : index
    %8 = memref.load %arg1[%c0] : memref<1xi32, #tpu.memory_space<smem>>
    %c-1640531527_i32 = arith.constant -1640531527 : i32
    %9 = arith.muli %8, %c-1640531527_i32 : i32
    %c2135587861_i32 = arith.constant 2135587861 : i32
    %10 = arith.addi %9, %c2135587861_i32 : i32
    %c-1640531527_i32_0 = arith.constant -1640531527 : i32
    %11 = vector.broadcast %c-1640531527_i32_0 : i32 to vector<2x1024xi32>
    %12 = arith.muli %7, %11 : vector<2x1024xi32>
    %13 = vector.broadcast %10 : i32 to vector<2x1024xi32>
    %14 = arith.addi %12, %13 : vector<2x1024xi32>
    %c16_i32 = arith.constant 16 : i32
    %15 = vector.broadcast %c16_i32 : i32 to vector<2x1024xi32>
    %16 = arith.shrsi %14, %15 : vector<2x1024xi32>
    %c65535_i32 = arith.constant 65535 : i32
    %17 = vector.broadcast %c65535_i32 : i32 to vector<2x1024xi32>
    %18 = arith.andi %16, %17 : vector<2x1024xi32>
    %19 = arith.xori %14, %18 : vector<2x1024xi32>
    %c-2048144789_i32 = arith.constant -2048144789 : i32
    %20 = vector.broadcast %c-2048144789_i32 : i32 to vector<2x1024xi32>
    %21 = arith.muli %19, %20 : vector<2x1024xi32>
    %c13_i32 = arith.constant 13 : i32
    %22 = vector.broadcast %c13_i32 : i32 to vector<2x1024xi32>
    %23 = arith.shrsi %21, %22 : vector<2x1024xi32>
    %c524287_i32 = arith.constant 524287 : i32
    %24 = vector.broadcast %c524287_i32 : i32 to vector<2x1024xi32>
    %25 = arith.andi %23, %24 : vector<2x1024xi32>
    %26 = arith.xori %21, %25 : vector<2x1024xi32>
    %c-1028477387_i32 = arith.constant -1028477387 : i32
    %27 = vector.broadcast %c-1028477387_i32 : i32 to vector<2x1024xi32>
    %28 = arith.muli %26, %27 : vector<2x1024xi32>
    %c16_i32_1 = arith.constant 16 : i32
    %29 = vector.broadcast %c16_i32_1 : i32 to vector<2x1024xi32>
    %30 = arith.shrsi %28, %29 : vector<2x1024xi32>
    %c65535_i32_2 = arith.constant 65535 : i32
    %31 = vector.broadcast %c65535_i32_2 : i32 to vector<2x1024xi32>
    %32 = arith.andi %30, %31 : vector<2x1024xi32>
    %33 = arith.xori %28, %32 : vector<2x1024xi32>
    %c9_i32 = arith.constant 9 : i32
    %34 = vector.broadcast %c9_i32 : i32 to vector<2x1024xi32>
    %35 = arith.shrsi %33, %34 : vector<2x1024xi32>
    %c8388607_i32 = arith.constant 8388607 : i32
    %36 = vector.broadcast %c8388607_i32 : i32 to vector<2x1024xi32>
    %37 = arith.andi %35, %36 : vector<2x1024xi32>
    %38 = arith.sitofp %37 : vector<2x1024xi32> to vector<2x1024xf32>
    %cst = arith.constant 5.000000e-01 : f32
    %39 = vector.broadcast %cst : f32 to vector<2x1024xf32>
    %40 = arith.addf %38, %39 : vector<2x1024xf32>
    %cst_3 = arith.constant 1.1920929E-7 : f32
    %41 = vector.broadcast %cst_3 : f32 to vector<2x1024xf32>
    %42 = arith.mulf %40, %41 : vector<2x1024xf32>
    %cst_4 = arith.constant 2.000000e+00 : f32
    %43 = vector.broadcast %cst_4 : f32 to vector<2x1024xf32>
    %44 = arith.mulf %43, %42 : vector<2x1024xf32>
    %cst_5 = arith.constant 1.000000e+00 : f32
    %45 = vector.broadcast %cst_5 : f32 to vector<2x1024xf32>
    %46 = arith.subf %44, %45 : vector<2x1024xf32>
    %cst_6 = arith.constant 1.000000e+00 : f32
    %47 = vector.broadcast %cst_6 : f32 to vector<2x1024xf32>
    %48 = arith.subf %47, %46 : vector<2x1024xf32>
    %cst_7 = arith.constant 1.000000e+00 : f32
    %49 = vector.broadcast %cst_7 : f32 to vector<2x1024xf32>
    %50 = arith.addf %49, %46 : vector<2x1024xf32>
    %51 = arith.mulf %48, %50 : vector<2x1024xf32>
    %52 = math.log %51 : vector<2x1024xf32>
    %cst_8 = arith.constant 0.000000e+00 : f32
    %53 = vector.broadcast %cst_8 : f32 to vector<2x1024xf32>
    %54 = arith.subf %53, %52 : vector<2x1024xf32>
    %cst_9 = arith.constant 2.500000e+00 : f32
    %55 = vector.broadcast %cst_9 : f32 to vector<2x1024xf32>
    %56 = arith.subf %54, %55 : vector<2x1024xf32>
    %cst_10 = arith.constant 2.81022636E-8 : f32
    %57 = vector.broadcast %cst_10 : f32 to vector<2x1024xf32>
    %58 = arith.mulf %57, %56 : vector<2x1024xf32>
    %cst_11 = arith.constant 3.43273939E-7 : f32
    %59 = vector.broadcast %cst_11 : f32 to vector<2x1024xf32>
    %60 = arith.addf %58, %59 : vector<2x1024xf32>
    %61 = arith.mulf %60, %56 : vector<2x1024xf32>
    %cst_12 = arith.constant -3.5233877E-6 : f32
    %62 = vector.broadcast %cst_12 : f32 to vector<2x1024xf32>
    %63 = arith.addf %61, %62 : vector<2x1024xf32>
    %64 = arith.mulf %63, %56 : vector<2x1024xf32>
    %cst_13 = arith.constant -4.39150654E-6 : f32
    %65 = vector.broadcast %cst_13 : f32 to vector<2x1024xf32>
    %66 = arith.addf %64, %65 : vector<2x1024xf32>
    %67 = arith.mulf %66, %56 : vector<2x1024xf32>
    %cst_14 = arith.constant 2.1858087E-4 : f32
    %68 = vector.broadcast %cst_14 : f32 to vector<2x1024xf32>
    %69 = arith.addf %67, %68 : vector<2x1024xf32>
    %70 = arith.mulf %69, %56 : vector<2x1024xf32>
    %cst_15 = arith.constant -0.00125372503 : f32
    %71 = vector.broadcast %cst_15 : f32 to vector<2x1024xf32>
    %72 = arith.addf %70, %71 : vector<2x1024xf32>
    %73 = arith.mulf %72, %56 : vector<2x1024xf32>
    %cst_16 = arith.constant -0.00417768164 : f32
    %74 = vector.broadcast %cst_16 : f32 to vector<2x1024xf32>
    %75 = arith.addf %73, %74 : vector<2x1024xf32>
    %76 = arith.mulf %75, %56 : vector<2x1024xf32>
    %cst_17 = arith.constant 0.246640727 : f32
    %77 = vector.broadcast %cst_17 : f32 to vector<2x1024xf32>
    %78 = arith.addf %76, %77 : vector<2x1024xf32>
    %79 = arith.mulf %78, %56 : vector<2x1024xf32>
    %cst_18 = arith.constant 1.50140941 : f32
    %80 = vector.broadcast %cst_18 : f32 to vector<2x1024xf32>
    %81 = arith.addf %79, %80 : vector<2x1024xf32>
    %82 = math.sqrt %54 : vector<2x1024xf32>
    %cst_19 = arith.constant 3.000000e+00 : f32
    %83 = vector.broadcast %cst_19 : f32 to vector<2x1024xf32>
    %84 = arith.subf %82, %83 : vector<2x1024xf32>
    %cst_20 = arith.constant -2.00214257E-4 : f32
    %85 = vector.broadcast %cst_20 : f32 to vector<2x1024xf32>
    %86 = arith.mulf %85, %84 : vector<2x1024xf32>
    %cst_21 = arith.constant 1.00950558E-4 : f32
    %87 = vector.broadcast %cst_21 : f32 to vector<2x1024xf32>
    %88 = arith.addf %86, %87 : vector<2x1024xf32>
    %89 = arith.mulf %88, %84 : vector<2x1024xf32>
    %cst_22 = arith.constant 0.00134934322 : f32
    %90 = vector.broadcast %cst_22 : f32 to vector<2x1024xf32>
    %91 = arith.addf %89, %90 : vector<2x1024xf32>
    %92 = arith.mulf %91, %84 : vector<2x1024xf32>
    %cst_23 = arith.constant -0.00367342844 : f32
    %93 = vector.broadcast %cst_23 : f32 to vector<2x1024xf32>
    %94 = arith.addf %92, %93 : vector<2x1024xf32>
    %95 = arith.mulf %94, %84 : vector<2x1024xf32>
    %cst_24 = arith.constant 0.00573950773 : f32
    %96 = vector.broadcast %cst_24 : f32 to vector<2x1024xf32>
    %97 = arith.addf %95, %96 : vector<2x1024xf32>
    %98 = arith.mulf %97, %84 : vector<2x1024xf32>
    %cst_25 = arith.constant -0.0076224613 : f32
    %99 = vector.broadcast %cst_25 : f32 to vector<2x1024xf32>
    %100 = arith.addf %98, %99 : vector<2x1024xf32>
    %101 = arith.mulf %100, %84 : vector<2x1024xf32>
    %cst_26 = arith.constant 0.00943887047 : f32
    %102 = vector.broadcast %cst_26 : f32 to vector<2x1024xf32>
    %103 = arith.addf %101, %102 : vector<2x1024xf32>
    %104 = arith.mulf %103, %84 : vector<2x1024xf32>
    %cst_27 = arith.constant 1.00167406 : f32
    %105 = vector.broadcast %cst_27 : f32 to vector<2x1024xf32>
    %106 = arith.addf %104, %105 : vector<2x1024xf32>
    %107 = arith.mulf %106, %84 : vector<2x1024xf32>
    %cst_28 = arith.constant 2.83297682 : f32
    %108 = vector.broadcast %cst_28 : f32 to vector<2x1024xf32>
    %109 = arith.addf %107, %108 : vector<2x1024xf32>
    %cst_29 = arith.constant 5.000000e+00 : f32
    %110 = vector.broadcast %cst_29 : f32 to vector<2x1024xf32>
    %111 = arith.cmpf olt, %54, %110 : vector<2x1024xf32>
    %112 = arith.select %111, %81, %109 : vector<2x1024xi1>, vector<2x1024xf32>
    %113 = arith.mulf %112, %46 : vector<2x1024xf32>
    %cst_30 = arith.constant 0.282842726 : f32
    %114 = vector.broadcast %cst_30 : f32 to vector<2x1024xf32>
    %115 = arith.mulf %113, %114 : vector<2x1024xf32>
    %c0_31 = arith.constant 0 : index
    %c0_32 = arith.constant 0 : index
    %116 = vector.load %arg2[%c0_31, %c0_32] : memref<2x1024xf32, #tpu.memory_space<vmem>>, vector<2x1024xf32>
    tpu.vector_store %arg2[%c0_31, %c0_32], %115 {strides = array<i32>} : memref<2x1024xf32, #tpu.memory_space<vmem>>, vector<2x1024xf32>,
    return
  }
  func.func @transform_0(%arg0: i32, %arg1: memref<1xi32, #tpu.memory_space<smem>>) -> (i32, i32) {
    %c0_i32 = arith.constant 0 : i32
    %c0_i32_0 = arith.constant 0 : i32
    return %arg0, %c0_i32 : i32, i32
  }
}

</mosaic_0001>

<llo_original>
// kernel: tpu_custom_call.1
$region0: #{tpu_custom_call.1}
  #allocation0 [shape = 'u32[]', space=smem, size = 0x4, offset = 0x4, fixed_abs, tag = 'smem constant byte address 0x4 - core index']
  #allocation1 [shape = 'u32[72,128]{1,0:T(1,128)}', space=vmem, size = 0x9000, scoped, tag = 'internal scratch']
  #allocation2 [shape = 's32[1]{0}', space=sflag, size = 0x4, scoped, tag = 'scoped memory for tpu_custom_call.1']
  #allocation3 [shape = 's32[1]{0:T(128)S(6)}', space=smem, size = 0x200, scoped, tag = 'prefetched SMEM operand 0']
  %s0 = inlined_call_operand.<no memory space> [shape: s32[1], index: 0, kind: input, shape index: {}]
  %s1 = inlined_call_operand.hbm [shape: f32[2,1024], index: 1, kind: output, shape index: {}]
  %s2 = sld [smem:[#allocation0]]
  $region10: #{tpu_custom_call.1} parent=0
    _
  %s4 = ssub.s32 1, %s2
  %s5 = scalar_select 0, %s4, %s2
  %6 = sst [smem:[#allocation3]] %s0
  $region1: #{tpu_custom_call.1} parent=0
    #allocation4 [shape = 'u8[8192]{0}', space=vmem, size = 0x2000, scoped, tag = 'output window, operand 0, single buffered']
    #allocation5 [shape = 's32[1]{0}', space=sflag, size = 0x4, scoped, tag = 'scoped memory for tpu_custom_call.1']
    %7 = vsyncpa [#allocation5], 0
    %v8 = vlaneseq
    %v9 = vshrl.u32 %v8, 7
    %v10 = vlaneseq
    %v11 = vand.u32 %v10, 127
    %v12 = vadd.s32 %v11, 128
    %v13 = vadd.s32 %v11, 256
    %v14 = vadd.s32 %v11, 384
    %v15 = vadd.s32 %v11, 512
    %v16 = vadd.s32 %v11, 640
    %v17 = vadd.s32 %v11, 768
    %v18 = vadd.s32 %v11, 896
    %s19 = smul.u32 0, 2048
    %v20 = vmul.u32 %v9, 1024
    %v21 = vstv %s19
    %v22 = vadd.s32 %v21, %v20
    %v23 = vadd.s32 %v22, %v11
    %v24 = vadd.s32 %v22, %v12
    %v25 = vadd.s32 %v22, %v13
    %v26 = vadd.s32 %v22, %v14
    %v27 = vadd.s32 %v22, %v15
    %v28 = vadd.s32 %v22, %v16
    %v29 = vadd.s32 %v22, %v17
    %v30 = vadd.s32 %v22, %v18
    %s31 = sld [smem:[#allocation3]]
    %s32 = smul.u32 %s31, 2654435769
    %s33 = sadd.s32 %s32, 2135587861
    %v34 = vmul.u32 %v23, 2654435769
    %v35 = vmul.u32 %v24, 2654435769
    %v36 = vmul.u32 %v25, 2654435769
    %v37 = vmul.u32 %v26, 2654435769
    %v38 = vmul.u32 %v27, 2654435769
    %v39 = vmul.u32 %v28, 2654435769
    %v40 = vmul.u32 %v29, 2654435769
    %v41 = vmul.u32 %v30, 2654435769
    %v42 = vstv %s33
    %v43 = vadd.s32 %v34, %v42
    %v44 = vadd.s32 %v35, %v42
    %v45 = vadd.s32 %v36, %v42
    %v46 = vadd.s32 %v37, %v42
    %v47 = vadd.s32 %v38, %v42
    %v48 = vadd.s32 %v39, %v42
    %v49 = vadd.s32 %v40, %v42
    %v50 = vadd.s32 %v41, %v42
    %v51 = vshra.s32 %v43, 16
    %v52 = vshra.s32 %v44, 16
    %v53 = vshra.s32 %v45, 16
    %v54 = vshra.s32 %v46, 16
    %v55 = vshra.s32 %v47, 16
    %v56 = vshra.s32 %v48, 16
    %v57 = vshra.s32 %v49, 16
    %v58 = vshra.s32 %v50, 16
    %v59 = vand.u32 %v51, 65535
    %v60 = vand.u32 %v52, 65535
    %v61 = vand.u32 %v53, 65535
    %v62 = vand.u32 %v54, 65535
    %v63 = vand.u32 %v55, 65535
    %v64 = vand.u32 %v56, 65535
    %v65 = vand.u32 %v57, 65535
    %v66 = vand.u32 %v58, 65535
    %v67 = vxor.u32 %v43, %v59
    %v68 = vxor.u32 %v44, %v60
    %v69 = vxor.u32 %v45, %v61
    %v70 = vxor.u32 %v46, %v62
    %v71 = vxor.u32 %v47, %v63
    %v72 = vxor.u32 %v48, %v64
    %v73 = vxor.u32 %v49, %v65
    %v74 = vxor.u32 %v50, %v66
    %v75 = vmul.u32 %v67, 2246822507
    %v76 = vmul.u32 %v68, 2246822507
    %v77 = vmul.u32 %v69, 2246822507
    %v78 = vmul.u32 %v70, 2246822507
    %v79 = vmul.u32 %v71, 2246822507
    %v80 = vmul.u32 %v72, 2246822507
    %v81 = vmul.u32 %v73, 2246822507
    %v82 = vmul.u32 %v74, 2246822507
    %v83 = vshra.s32 %v75, 13
    %v84 = vshra.s32 %v76, 13
    %v85 = vshra.s32 %v77, 13
    %v86 = vshra.s32 %v78, 13
    %v87 = vshra.s32 %v79, 13
    %v88 = vshra.s32 %v80, 13
    %v89 = vshra.s32 %v81, 13
    %v90 = vshra.s32 %v82, 13
    %v91 = vand.u32 %v83, 524287
    %v92 = vand.u32 %v84, 524287
    %v93 = vand.u32 %v85, 524287
    %v94 = vand.u32 %v86, 524287
    %v95 = vand.u32 %v87, 524287
    %v96 = vand.u32 %v88, 524287
    %v97 = vand.u32 %v89, 524287
    %v98 = vand.u32 %v90, 524287
    %v99 = vxor.u32 %v75, %v91
    %v100 = vxor.u32 %v76, %v92
    %v101 = vxor.u32 %v77, %v93
    %v102 = vxor.u32 %v78, %v94
    %v103 = vxor.u32 %v79, %v95
    %v104 = vxor.u32 %v80, %v96
    %v105 = vxor.u32 %v81, %v97
    %v106 = vxor.u32 %v82, %v98
    %v107 = vmul.u32 %v99, 3266489909
    %v108 = vmul.u32 %v100, 3266489909
    %v109 = vmul.u32 %v101, 3266489909
    %v110 = vmul.u32 %v102, 3266489909
    %v111 = vmul.u32 %v103, 3266489909
    %v112 = vmul.u32 %v104, 3266489909
    %v113 = vmul.u32 %v105, 3266489909
    %v114 = vmul.u32 %v106, 3266489909
    %v115 = vshra.s32 %v107, 16
    %v116 = vshra.s32 %v108, 16
    %v117 = vshra.s32 %v109, 16
    %v118 = vshra.s32 %v110, 16
    %v119 = vshra.s32 %v111, 16
    %v120 = vshra.s32 %v112, 16
    %v121 = vshra.s32 %v113, 16
    %v122 = vshra.s32 %v114, 16
    %v123 = vand.u32 %v115, 65535
    %v124 = vand.u32 %v116, 65535
    %v125 = vand.u32 %v117, 65535
    %v126 = vand.u32 %v118, 65535
    %v127 = vand.u32 %v119, 65535
    %v128 = vand.u32 %v120, 65535
    %v129 = vand.u32 %v121, 65535
    %v130 = vand.u32 %v122, 65535
    %v131 = vxor.u32 %v107, %v123
    %v132 = vxor.u32 %v108, %v124
    %v133 = vxor.u32 %v109, %v125
    %v134 = vxor.u32 %v110, %v126
    %v135 = vxor.u32 %v111, %v127
    %v136 = vxor.u32 %v112, %v128
    %v137 = vxor.u32 %v113, %v129
    %v138 = vxor.u32 %v114, %v130
    %v139 = vshra.s32 %v131, 9
    %v140 = vshra.s32 %v132, 9
    %v141 = vshra.s32 %v133, 9
    %v142 = vshra.s32 %v134, 9
    %v143 = vshra.s32 %v135, 9
    %v144 = vshra.s32 %v136, 9
    %v145 = vshra.s32 %v137, 9
    %v146 = vshra.s32 %v138, 9
    %v147 = vand.u32 %v139, 8388607
    %v148 = vand.u32 %v140, 8388607
    %v149 = vand.u32 %v141, 8388607
    %v150 = vand.u32 %v142, 8388607
    %v151 = vand.u32 %v143, 8388607
    %v152 = vand.u32 %v144, 8388607
    %v153 = vand.u32 %v145, 8388607
    %v154 = vand.u32 %v146, 8388607
    %v155 = vcvt.s32.f32 %v147
    %v156 = vcvt.s32.f32 %v148
    %v157 = vcvt.s32.f32 %v149
    %v158 = vcvt.s32.f32 %v150
    %v159 = vcvt.s32.f32 %v151
    %v160 = vcvt.s32.f32 %v152
    %v161 = vcvt.s32.f32 %v153
    %v162 = vcvt.s32.f32 %v154
    %v163 = vadd.f32 %v155, 0.5
    %v164 = vadd.f32 %v156, 0.5
    %v165 = vadd.f32 %v157, 0.5
    %v166 = vadd.f32 %v158, 0.5
    %v167 = vadd.f32 %v159, 0.5
    %v168 = vadd.f32 %v160, 0.5
    %v169 = vadd.f32 %v161, 0.5
    %v170 = vadd.f32 %v162, 0.5
    %v171 = vmul.f32 %v163, 1.1920929e-07
    %v172 = vmul.f32 %v164, 1.1920929e-07
    %v173 = vmul.f32 %v165, 1.1920929e-07
    %v174 = vmul.f32 %v166, 1.1920929e-07
    %v175 = vmul.f32 %v167, 1.1920929e-07
    %v176 = vmul.f32 %v168, 1.1920929e-07
    %v177 = vmul.f32 %v169, 1.1920929e-07
    %v178 = vmul.f32 %v170, 1.1920929e-07
    %v179 = vmul.f32 %v171, 2.0
    %v180 = vmul.f32 %v172, 2.0
    %v181 = vmul.f32 %v173, 2.0
    %v182 = vmul.f32 %v174, 2.0
    %v183 = vmul.f32 %v175, 2.0
    %v184 = vmul.f32 %v176, 2.0
    %v185 = vmul.f32 %v177, 2.0
    %v186 = vmul.f32 %v178, 2.0
    %v187 = vsub.f32 %v179, 1.0
    %v188 = vsub.f32 %v180, 1.0
    %v189 = vsub.f32 %v181, 1.0
    %v190 = vsub.f32 %v182, 1.0
    %v191 = vsub.f32 %v183, 1.0
    %v192 = vsub.f32 %v184, 1.0
    %v193 = vsub.f32 %v185, 1.0
    %v194 = vsub.f32 %v186, 1.0
    %v195 = vsub.f32 1.0, %v187
    %v196 = vsub.f32 1.0, %v188
    %v197 = vsub.f32 1.0, %v189
    %v198 = vsub.f32 1.0, %v190
    %v199 = vsub.f32 1.0, %v191
    %v200 = vsub.f32 1.0, %v192
    %v201 = vsub.f32 1.0, %v193
    %v202 = vsub.f32 1.0, %v194
    %v203 = vadd.f32 %v187, 1.0
    %v204 = vadd.f32 %v188, 1.0
    %v205 = vadd.f32 %v189, 1.0
    %v206 = vadd.f32 %v190, 1.0
    %v207 = vadd.f32 %v191, 1.0
    %v208 = vadd.f32 %v192, 1.0
    %v209 = vadd.f32 %v193, 1.0
    %v210 = vadd.f32 %v194, 1.0
    %v211 = vmul.f32 %v195, %v203
    %v212 = vmul.f32 %v196, %v204
    %v213 = vmul.f32 %v197, %v205
    %v214 = vmul.f32 %v198, %v206
    %v215 = vmul.f32 %v199, %v207
    %v216 = vmul.f32 %v200, %v208
    %v217 = vmul.f32 %v201, %v209
    %v218 = vmul.f32 %v202, %v210
    %v219 = vlog2.pop %v211
    %v220 = vmul.f32 %v219, 0.6931472
    %v221 = vlog2.pop %v212
    %v222 = vmul.f32 %v221, 0.6931472
    %v223 = vlog2.pop %v213
    %v224 = vmul.f32 %v223, 0.6931472
    %v225 = vlog2.pop %v214
    %v226 = vmul.f32 %v225, 0.6931472
    %v227 = vlog2.pop %v215
    %v228 = vmul.f32 %v227, 0.6931472
    %v229 = vlog2.pop %v216
    %v230 = vmul.f32 %v229, 0.6931472
    %v231 = vlog2.pop %v217
    %v232 = vmul.f32 %v231, 0.6931472
    %v233 = vlog2.pop %v218
    %v234 = vmul.f32 %v233, 0.6931472
    %v235 = vsub.f32 0.0, %v220
    %v236 = vsub.f32 0.0, %v222
    %v237 = vsub.f32 0.0, %v224
    %v238 = vsub.f32 0.0, %v226
    %v239 = vsub.f32 0.0, %v228
    %v240 = vsub.f32 0.0, %v230
    %v241 = vsub.f32 0.0, %v232
    %v242 = vsub.f32 0.0, %v234
    %v243 = vsub.f32 %v235, 2.5
    %v244 = vsub.f32 %v236, 2.5
    %v245 = vsub.f32 %v237, 2.5
    %v246 = vsub.f32 %v238, 2.5
    %v247 = vsub.f32 %v239, 2.5
    %v248 = vsub.f32 %v240, 2.5
    %v249 = vsub.f32 %v241, 2.5
    %v250 = vsub.f32 %v242, 2.5
    %v251 = vmul.f32 %v243, 2.8102264e-08
    %v252 = vmul.f32 %v244, 2.8102264e-08
    %v253 = vmul.f32 %v245, 2.8102264e-08
    %v254 = vmul.f32 %v246, 2.8102264e-08
    %v255 = vmul.f32 %v247, 2.8102264e-08
    %v256 = vmul.f32 %v248, 2.8102264e-08
    %v257 = vmul.f32 %v249, 2.8102264e-08
    %v258 = vmul.f32 %v250, 2.8102264e-08
    %v259 = vadd.f32 %v251, 3.4327394e-07
    %v260 = vadd.f32 %v252, 3.4327394e-07
    %v261 = vadd.f32 %v253, 3.4327394e-07
    %v262 = vadd.f32 %v254, 3.4327394e-07
    %v263 = vadd.f32 %v255, 3.4327394e-07
    %v264 = vadd.f32 %v256, 3.4327394e-07
    %v265 = vadd.f32 %v257, 3.4327394e-07
    %v266 = vadd.f32 %v258, 3.4327394e-07
    %v267 = vmul.f32 %v259, %v243
    %v268 = vmul.f32 %v260, %v244
    %v269 = vmul.f32 %v261, %v245
    %v270 = vmul.f32 %v262, %v246
    %v271 = vmul.f32 %v263, %v247
    %v272 = vmul.f32 %v264, %v248
    %v273 = vmul.f32 %v265, %v249
    %v274 = vmul.f32 %v266, %v250
    %v275 = vadd.f32 %v267, -3.5233877e-06
    %v276 = vadd.f32 %v268, -3.5233877e-06
    %v277 = vadd.f32 %v269, -3.5233877e-06
    %v278 = vadd.f32 %v270, -3.5233877e-06
    %v279 = vadd.f32 %v271, -3.5233877e-06
    %v280 = vadd.f32 %v272, -3.5233877e-06
    %v281 = vadd.f32 %v273, -3.5233877e-06
    %v282 = vadd.f32 %v274, -3.5233877e-06
    %v283 = vmul.f32 %v275, %v243
    %v284 = vmul.f32 %v276, %v244
    %v285 = vmul.f32 %v277, %v245
    %v286 = vmul.f32 %v278, %v246
    %v287 = vmul.f32 %v279, %v247
    %v288 = vmul.f32 %v280, %v248
    %v289 = vmul.f32 %v281, %v249
    %v290 = vmul.f32 %v282, %v250
    %v291 = vadd.f32 %v283, -4.3915065e-06
    %v292 = vadd.f32 %v284, -4.3915065e-06
    %v293 = vadd.f32 %v285, -4.3915065e-06
    %v294 = vadd.f32 %v286, -4.3915065e-06
    %v295 = vadd.f32 %v287, -4.3915065e-06
    %v296 = vadd.f32 %v288, -4.3915065e-06
    %v297 = vadd.f32 %v289, -4.3915065e-06
    %v298 = vadd.f32 %v290, -4.3915065e-06
    %v299 = vmul.f32 %v291, %v243
    %v300 = vmul.f32 %v292, %v244
    %v301 = vmul.f32 %v293, %v245
    %v302 = vmul.f32 %v294, %v246
    %v303 = vmul.f32 %v295, %v247
    %v304 = vmul.f32 %v296, %v248
    %v305 = vmul.f32 %v297, %v249
    %v306 = vmul.f32 %v298, %v250
    %v307 = vadd.f32 %v299, 0.00021858087
    %v308 = vadd.f32 %v300, 0.00021858087
    %v309 = vadd.f32 %v301, 0.00021858087
    %v310 = vadd.f32 %v302, 0.00021858087
    %v311 = vadd.f32 %v303, 0.00021858087
    %v312 = vadd.f32 %v304, 0.00021858087
    %v313 = vadd.f32 %v305, 0.00021858087
    %v314 = vadd.f32 %v306, 0.00021858087
    %v315 = vmul.f32 %v307, %v243
    %v316 = vmul.f32 %v308, %v244
    %v317 = vmul.f32 %v309, %v245
    %v318 = vmul.f32 %v310, %v246
    %v319 = vmul.f32 %v311, %v247
    %v320 = vmul.f32 %v312, %v248
    %v321 = vmul.f32 %v313, %v249
    %v322 = vmul.f32 %v314, %v250
    %v323 = vadd.f32 %v315, -0.001253725
    %v324 = vadd.f32 %v316, -0.001253725
    %v325 = vadd.f32 %v317, -0.001253725
    %v326 = vadd.f32 %v318, -0.001253725
    %v327 = vadd.f32 %v319, -0.001253725
    %v328 = vadd.f32 %v320, -0.001253725
    %v329 = vadd.f32 %v321, -0.001253725
    %v330 = vadd.f32 %v322, -0.001253725
    %v331 = vmul.f32 %v323, %v243
    %v332 = vmul.f32 %v324, %v244
    %v333 = vmul.f32 %v325, %v245
    %v334 = vmul.f32 %v326, %v246
    %v335 = vmul.f32 %v327, %v247
    %v336 = vmul.f32 %v328, %v248
    %v337 = vmul.f32 %v329, %v249
    %v338 = vmul.f32 %v330, %v250
    %v339 = vadd.f32 %v331, -0.0041776816
    %v340 = vadd.f32 %v332, -0.0041776816
    %v341 = vadd.f32 %v333, -0.0041776816
    %v342 = vadd.f32 %v334, -0.0041776816
    %v343 = vadd.f32 %v335, -0.0041776816
    %v344 = vadd.f32 %v336, -0.0041776816
    %v345 = vadd.f32 %v337, -0.0041776816
    %v346 = vadd.f32 %v338, -0.0041776816
    %v347 = vmul.f32 %v339, %v243
    %v348 = vmul.f32 %v340, %v244
    %v349 = vmul.f32 %v341, %v245
    %v350 = vmul.f32 %v342, %v246
    %v351 = vmul.f32 %v343, %v247
    %v352 = vmul.f32 %v344, %v248
    %v353 = vmul.f32 %v345, %v249
    %v354 = vmul.f32 %v346, %v250
    %v355 = vadd.f32 %v347, 0.24664073
    %v356 = vadd.f32 %v348, 0.24664073
    %v357 = vadd.f32 %v349, 0.24664073
    %v358 = vadd.f32 %v350, 0.24664073
    %v359 = vadd.f32 %v351, 0.24664073
    %v360 = vadd.f32 %v352, 0.24664073
    %v361 = vadd.f32 %v353, 0.24664073
    %v362 = vadd.f32 %v354, 0.24664073
    %v363 = vmul.f32 %v355, %v243
    %v364 = vmul.f32 %v356, %v244
    %v365 = vmul.f32 %v357, %v245
    %v366 = vmul.f32 %v358, %v246
    %v367 = vmul.f32 %v359, %v247
    %v368 = vmul.f32 %v360, %v248
    %v369 = vmul.f32 %v361, %v249
    %v370 = vmul.f32 %v362, %v250
    %v371 = vadd.f32 %v363, 1.5014094
    %v372 = vadd.f32 %v364, 1.5014094
    %v373 = vadd.f32 %v365, 1.5014094
    %v374 = vadd.f32 %v366, 1.5014094
    %v375 = vadd.f32 %v367, 1.5014094
    %v376 = vadd.f32 %v368, 1.5014094
    %v377 = vadd.f32 %v369, 1.5014094
    %v378 = vadd.f32 %v370, 1.5014094
    %v379 = vrsqrt.pop %v235
    %v380 = vmul.f32 %v379, %v235
    %v381 = vmul.f32 %v380, %v379
    %v382 = vmul.f32 0.5, %v381
    %v383 = vsub.f32 1.5, %v382
    %v384 = vmul.f32 %v379, %v383
    %v385 = vmul.f32 %v235, %v384
    %vm386 = vcmp.eq.f32.partialorder %v235, inf
    %v387 = vsel %vm386, %v235, %v385
    %vm388 = vcmp.eq.f32.partialorder %v235, 0.0
    %v389 = vand.u32 %v235, 2147483648
    %v390 = vsel %vm388, %v389, %v387
    %v391 = vrsqrt.pop %v236
    %v392 = vmul.f32 %v391, %v236
    %v393 = vmul.f32 %v392, %v391
    %v394 = vmul.f32 0.5, %v393
    %v395 = vsub.f32 1.5, %v394
    %v396 = vmul.f32 %v391, %v395
    %v397 = vmul.f32 %v236, %v396
    %vm398 = vcmp.eq.f32.partialorder %v236, inf
    %v399 = vsel %vm398, %v236, %v397
    %vm400 = vcmp.eq.f32.partialorder %v236, 0.0
    %v401 = vand.u32 %v236, 2147483648
    %v402 = vsel %vm400, %v401, %v399
    %v403 = vrsqrt.pop %v237
    %v404 = vmul.f32 %v403, %v237
    %v405 = vmul.f32 %v404, %v403
    %v406 = vmul.f32 0.5, %v405
    %v407 = vsub.f32 1.5, %v406
    %v408 = vmul.f32 %v403, %v407
    %v409 = vmul.f32 %v237, %v408
    %vm410 = vcmp.eq.f32.partialorder %v237, inf
    %v411 = vsel %vm410, %v237, %v409
    %vm412 = vcmp.eq.f32.partialorder %v237, 0.0
    %v413 = vand.u32 %v237, 2147483648
    %v414 = vsel %vm412, %v413, %v411
    %v415 = vrsqrt.pop %v238
    %v416 = vmul.f32 %v415, %v238
    %v417 = vmul.f32 %v416, %v415
    %v418 = vmul.f32 0.5, %v417
    %v419 = vsub.f32 1.5, %v418
    %v420 = vmul.f32 %v415, %v419
    %v421 = vmul.f32 %v238, %v420
    %vm422 = vcmp.eq.f32.partialorder %v238, inf
    %v423 = vsel %vm422, %v238, %v421
    %vm424 = vcmp.eq.f32.partialorder %v238, 0.0
    %v425 = vand.u32 %v238, 2147483648
    %v426 = vsel %vm424, %v425, %v423
    %v427 = vrsqrt.pop %v239
    %v428 = vmul.f32 %v427, %v239
    %v429 = vmul.f32 %v428, %v427
    %v430 = vmul.f32 0.5, %v429
    %v431 = vsub.f32 1.5, %v430
    %v432 = vmul.f32 %v427, %v431
    %v433 = vmul.f32 %v239, %v432
    %vm434 = vcmp.eq.f32.partialorder %v239, inf
    %v435 = vsel %vm434, %v239, %v433
    %vm436 = vcmp.eq.f32.partialorder %v239, 0.0
    %v437 = vand.u32 %v239, 2147483648
    %v438 = vsel %vm436, %v437, %v435
    %v439 = vrsqrt.pop %v240
    %v440 = vmul.f32 %v439, %v240
    %v441 = vmul.f32 %v440, %v439
    %v442 = vmul.f32 0.5, %v441
    %v443 = vsub.f32 1.5, %v442
    %v444 = vmul.f32 %v439, %v443
    %v445 = vmul.f32 %v240, %v444
    %vm446 = vcmp.eq.f32.partialorder %v240, inf
    %v447 = vsel %vm446, %v240, %v445
    %vm448 = vcmp.eq.f32.partialorder %v240, 0.0
    %v449 = vand.u32 %v240, 2147483648
    %v450 = vsel %vm448, %v449, %v447
    %v451 = vrsqrt.pop %v241
    %v452 = vmul.f32 %v451, %v241
    %v453 = vmul.f32 %v452, %v451
    %v454 = vmul.f32 0.5, %v453
    %v455 = vsub.f32 1.5, %v454
    %v456 = vmul.f32 %v451, %v455
    %v457 = vmul.f32 %v241, %v456
    %vm458 = vcmp.eq.f32.partialorder %v241, inf
    %v459 = vsel %vm458, %v241, %v457
    %vm460 = vcmp.eq.f32.partialorder %v241, 0.0
    %v461 = vand.u32 %v241, 2147483648
    %v462 = vsel %vm460, %v461, %v459
    %v463 = vrsqrt.pop %v242
    %v464 = vmul.f32 %v463, %v242
    %v465 = vmul.f32 %v464, %v463
    %v466 = vmul.f32 0.5, %v465
    %v467 = vsub.f32 1.5, %v466
    %v468 = vmul.f32 %v463, %v467
    %v469 = vmul.f32 %v242, %v468
    %vm470 = vcmp.eq.f32.partialorder %v242, inf
    %v471 = vsel %vm470, %v242, %v469
    %vm472 = vcmp.eq.f32.partialorder %v242, 0.0
    %v473 = vand.u32 %v242, 2147483648
    %v474 = vsel %vm472, %v473, %v471
    %v475 = vsub.f32 %v390, 3.0
    %v476 = vsub.f32 %v402, 3.0
    %v477 = vsub.f32 %v414, 3.0
    %v478 = vsub.f32 %v426, 3.0
    %v479 = vsub.f32 %v438, 3.0
    %v480 = vsub.f32 %v450, 3.0
    %v481 = vsub.f32 %v462, 3.0
    %v482 = vsub.f32 %v474, 3.0
    %v483 = vmul.f32 %v475, -0.00020021426
    %v484 = vmul.f32 %v476, -0.00020021426
    %v485 = vmul.f32 %v477, -0.00020021426
    %v486 = vmul.f32 %v478, -0.00020021426
    %v487 = vmul.f32 %v479, -0.00020021426
    %v488 = vmul.f32 %v480, -0.00020021426
    %v489 = vmul.f32 %v481, -0.00020021426
    %v490 = vmul.f32 %v482, -0.00020021426
    %v491 = vadd.f32 %v483, 0.00010095056
    %v492 = vadd.f32 %v484, 0.00010095056
    %v493 = vadd.f32 %v485, 0.00010095056
    %v494 = vadd.f32 %v486, 0.00010095056
    %v495 = vadd.f32 %v487, 0.00010095056
    %v496 = vadd.f32 %v488, 0.00010095056
    %v497 = vadd.f32 %v489, 0.00010095056
    %v498 = vadd.f32 %v490, 0.00010095056
    %v499 = vmul.f32 %v491, %v475
    %v500 = vmul.f32 %v492, %v476
    %v501 = vmul.f32 %v493, %v477
    %v502 = vmul.f32 %v494, %v478
    %v503 = vmul.f32 %v495, %v479
    %v504 = vmul.f32 %v496, %v480
    %v505 = vmul.f32 %v497, %v481
    %v506 = vmul.f32 %v498, %v482
    %v507 = vadd.f32 %v499, 0.0013493432
    %v508 = vadd.f32 %v500, 0.0013493432
    %v509 = vadd.f32 %v501, 0.0013493432
    %v510 = vadd.f32 %v502, 0.0013493432
    %v511 = vadd.f32 %v503, 0.0013493432
    %v512 = vadd.f32 %v504, 0.0013493432
    %v513 = vadd.f32 %v505, 0.0013493432
    %v514 = vadd.f32 %v506, 0.0013493432
    %v515 = vmul.f32 %v507, %v475
    %v516 = vmul.f32 %v508, %v476
    %v517 = vmul.f32 %v509, %v477
    %v518 = vmul.f32 %v510, %v478
    %v519 = vmul.f32 %v511, %v479
    %v520 = vmul.f32 %v512, %v480
    %v521 = vmul.f32 %v513, %v481
    %v522 = vmul.f32 %v514, %v482
    %v523 = vadd.f32 %v515, -0.0036734284
    %v524 = vadd.f32 %v516, -0.0036734284
    %v525 = vadd.f32 %v517, -0.0036734284
    %v526 = vadd.f32 %v518, -0.0036734284
    %v527 = vadd.f32 %v519, -0.0036734284
    %v528 = vadd.f32 %v520, -0.0036734284
    %v529 = vadd.f32 %v521, -0.0036734284
    %v530 = vadd.f32 %v522, -0.0036734284
    %v531 = vmul.f32 %v523, %v475
    %v532 = vmul.f32 %v524, %v476
    %v533 = vmul.f32 %v525, %v477
    %v534 = vmul.f32 %v526, %v478
    %v535 = vmul.f32 %v527, %v479
    %v536 = vmul.f32 %v528, %v480
    %v537 = vmul.f32 %v529, %v481
    %v538 = vmul.f32 %v530, %v482
    %v539 = vadd.f32 %v531, 0.0057395077
    %v540 = vadd.f32 %v532, 0.0057395077
    %v541 = vadd.f32 %v533, 0.0057395077
    %v542 = vadd.f32 %v534, 0.0057395077
    %v543 = vadd.f32 %v535, 0.0057395077
    %v544 = vadd.f32 %v536, 0.0057395077
    %v545 = vadd.f32 %v537, 0.0057395077
    %v546 = vadd.f32 %v538, 0.0057395077
    %v547 = vmul.f32 %v539, %v475
    %v548 = vmul.f32 %v540, %v476
    %v549 = vmul.f32 %v541, %v477
    %v550 = vmul.f32 %v542, %v478
    %v551 = vmul.f32 %v543, %v479
    %v552 = vmul.f32 %v544, %v480
    %v553 = vmul.f32 %v545, %v481
    %v554 = vmul.f32 %v546, %v482
    %v555 = vadd.f32 %v547, -0.0076224613
    %v556 = vadd.f32 %v548, -0.0076224613
    %v557 = vadd.f32 %v549, -0.0076224613
    %v558 = vadd.f32 %v550, -0.0076224613
    %v559 = vadd.f32 %v551, -0.0076224613
    %v560 = vadd.f32 %v552, -0.0076224613
    %v561 = vadd.f32 %v553, -0.0076224613
    %v562 = vadd.f32 %v554, -0.0076224613
    %v563 = vmul.f32 %v555, %v475
    %v564 = vmul.f32 %v556, %v476
    %v565 = vmul.f32 %v557, %v477
    %v566 = vmul.f32 %v558, %v478
    %v567 = vmul.f32 %v559, %v479
    %v568 = vmul.f32 %v560, %v480
    %v569 = vmul.f32 %v561, %v481
    %v570 = vmul.f32 %v562, %v482
    %v571 = vadd.f32 %v563, 0.0094388705
    %v572 = vadd.f32 %v564, 0.0094388705
    %v573 = vadd.f32 %v565, 0.0094388705
    %v574 = vadd.f32 %v566, 0.0094388705
    %v575 = vadd.f32 %v567, 0.0094388705
    %v576 = vadd.f32 %v568, 0.0094388705
    %v577 = vadd.f32 %v569, 0.0094388705
    %v578 = vadd.f32 %v570, 0.0094388705
    %v579 = vmul.f32 %v571, %v475
    %v580 = vmul.f32 %v572, %v476
    %v581 = vmul.f32 %v573, %v477
    %v582 = vmul.f32 %v574, %v478
    %v583 = vmul.f32 %v575, %v479
    %v584 = vmul.f32 %v576, %v480
    %v585 = vmul.f32 %v577, %v481
    %v586 = vmul.f32 %v578, %v482
    %v587 = vadd.f32 %v579, 1.001674
    %v588 = vadd.f32 %v580, 1.001674
    %v589 = vadd.f32 %v581, 1.001674
    %v590 = vadd.f32 %v582, 1.001674
    %v591 = vadd.f32 %v583, 1.001674
    %v592 = vadd.f32 %v584, 1.001674
    %v593 = vadd.f32 %v585, 1.001674
    %v594 = vadd.f32 %v586, 1.001674
    %v595 = vmul.f32 %v587, %v475
    %v596 = vmul.f32 %v588, %v476
    %v597 = vmul.f32 %v589, %v477
    %v598 = vmul.f32 %v590, %v478
    %v599 = vmul.f32 %v591, %v479
    %v600 = vmul.f32 %v592, %v480
    %v601 = vmul.f32 %v593, %v481
    %v602 = vmul.f32 %v594, %v482
    %v603 = vadd.f32 %v595, 2.8329768
    %v604 = vadd.f32 %v596, 2.8329768
    %v605 = vadd.f32 %v597, 2.8329768
    %v606 = vadd.f32 %v598, 2.8329768
    %v607 = vadd.f32 %v599, 2.8329768
    %v608 = vadd.f32 %v600, 2.8329768
    %v609 = vadd.f32 %v601, 2.8329768
    %v610 = vadd.f32 %v602, 2.8329768
    %vm611 = vcmp.lt.f32.partialorder %v235, 5.0
    %vm612 = vcmp.lt.f32.partialorder %v236, 5.0
    %vm613 = vcmp.lt.f32.partialorder %v237, 5.0
    %vm614 = vcmp.lt.f32.partialorder %v238, 5.0
    %vm615 = vcmp.lt.f32.partialorder %v239, 5.0
    %vm616 = vcmp.lt.f32.partialorder %v240, 5.0
    %vm617 = vcmp.lt.f32.partialorder %v241, 5.0
    %vm618 = vcmp.lt.f32.partialorder %v242, 5.0
    %v619 = vsel %vm611, %v371, %v603
    %v620 = vsel %vm612, %v372, %v604
    %v621 = vsel %vm613, %v373, %v605
    %v622 = vsel %vm614, %v374, %v606
    %v623 = vsel %vm615, %v375, %v607
    %v624 = vsel %vm616, %v376, %v608
    %v625 = vsel %vm617, %v377, %v609
    %v626 = vsel %vm618, %v378, %v610
    %v627 = vmul.f32 %v619, %v187
    %v628 = vmul.f32 %v620, %v188
    %v629 = vmul.f32 %v621, %v189
    %v630 = vmul.f32 %v622, %v190
    %v631 = vmul.f32 %v623, %v191
    %v632 = vmul.f32 %v624, %v192
    %v633 = vmul.f32 %v625, %v193
    %v634 = vmul.f32 %v626, %v194
    %v635 = vmul.f32 %v627, 0.28284273
    %v636 = vmul.f32 %v628, 0.28284273
    %v637 = vmul.f32 %v629, 0.28284273
    %v638 = vmul.f32 %v630, 0.28284273
    %v639 = vmul.f32 %v631, 0.28284273
    %v640 = vmul.f32 %v632, 0.28284273
    %v641 = vmul.f32 %v633, 0.28284273
    %v642 = vmul.f32 %v634, 0.28284273
    %v651 = vrot.slane %v636, 6
    %v652 = vrot.slane %v637, 4
    %v653 = vrot.slane %v638, 2
    %v654 = vrot.slane %v640, 6
    %v655 = vrot.slane %v641, 4
    %v656 = vrot.slane %v642, 2
    %vm657 = vcmask 1041408
    %v658 = vsel %vm657, %v635, %v651
    %vm659 = vcmask 1045508
    %v660 = vsel %vm659, %v652, %v653
    %vm661 = vcmask 1043456
    %v662 = vsel %vm661, %v658, %v660
    %v663 = vsel %vm657, %v639, %v654
    %v664 = vsel %vm659, %v655, %v656
    %v665 = vsel %vm661, %v663, %v664
    %668 = vst [vmem:[#allocation4] sm:$0xff] %v662
    %669 = vst [vmem:[#allocation4 + $0x8] sm:$0xff] %v665
    // Predicated region
    $region2: #{tpu_custom_call.1} parent=1 // pred_check
      _
    $region3: #{tpu_custom_call.1} parent=1 // pred_check_branch
      %671 = sbr.rel (0) target = $region5
    $region4: #{tpu_custom_call.1} parent=1 // pred_region
      %673 = vsyncadd [#allocation5], 0
      %s675 = sshll.u32 [#allocation4], 4
      %s676 = int_to_ptr.vmem [resolvable:$true] %s675
      %s677 = sshll.u32 %s1, 4
      %s678 = int_to_ptr.hbm [resolvable:$true] %s677
      %680 = dma.vmem_to_hbm [thread:$0]  %s676, 256, %s678, [#allocation5]
    $region5: #{tpu_custom_call.1} parent=1 // pred_fallthru
      _
    // Predicated region
    $region6: #{tpu_custom_call.1} parent=1 // pred_check
      _
    $region7: #{tpu_custom_call.1} parent=1 // pred_check_branch
      %682 = sbr.rel (0) target = $region9
    $region8: #{tpu_custom_call.1} parent=1 // pred_region
      %684 = dma.done [#allocation5], 256
    $region9: #{tpu_custom_call.1} parent=1 // pred_fallthru
      _
    %685 = vsyncpa [#allocation5], 1

</llo_original>
